<compile_context>
chip_gen: v5e
topology: v5e:2x2
jax: 0.10.0
libtpu: 0.0.40
codegen_flags: <defaults>
</compile_context>

<pallas_src>
import functools

import numpy as np
import jax
import jax.numpy as jnp
from jax.experimental import pallas as pl
from jax.experimental.pallas import tpu as pltpu

DIST_THRESH = 0.1


# -----------------------------------------------------------------------------
# Kernel A: plane-invariant point pipeline, tiled over N ("parallel").
# fc1 -> fc2 -> att projection (+ per-tile max of att for the global exp shift).
# Eval-mode BN scales are folded into w1/w2 on the host.
# -----------------------------------------------------------------------------
def _point_mlp_kernel(feat_ref, w1_ref, b1_ref, w2_ref, b2_ref, watt_ref,
                      h_ref, att_ref, tmax_ref):
    x = feat_ref[...]                                               # [TN, C]
    h = jnp.dot(x, w1_ref[...], preferred_element_type=jnp.float32)
    h = jnp.maximum(h + b1_ref[...], 0.0)
    h = jnp.dot(h, w2_ref[...], preferred_element_type=jnp.float32)
    h = jnp.maximum(h + b2_ref[...], 0.0)                           # [TN, C]
    att = jnp.dot(h, watt_ref[...], preferred_element_type=jnp.float32)
    h_ref[...] = h
    att_ref[...] = att
    tmax_ref[...] = jnp.max(att, axis=0, keepdims=True)[None]       # [1,1,C]


# -----------------------------------------------------------------------------
# Kernel B: per-plane mask + masked attention pooling.
# grid = (N tiles [outer, arbitrary], plane blocks of K [inner, arbitrary]).
# -----------------------------------------------------------------------------
def _plane_pool_kernel(meta_ref, geo_ref, h_ref, att_ref, gmax_ref,
                       wmlp_ref, bmlp_ref,
                       mask_ref, pool_ref,
                       e_scr, eh_scr, den_acc, num_acc, *, k_planes):
    K = k_planes
    i_n = pl.program_id(0)           # N-tile index (outer)
    i_p = pl.program_id(1)           # plane-block index (inner)
    n_n = pl.num_programs(0)

    # exp hoist: e/eh for this N tile are computed once (first plane block)
    # and reused for every plane block of the tile.
    @pl.when(i_p == 0)
    def _():
        e = jnp.exp(att_ref[...] - gmax_ref[...])                   # [TN, C]
        e_scr[...] = e
        eh_scr[...] = e * h_ref[...]

    # Lane-dense geometry: points on lanes.
    geo = geo_ref[...]                                              # [4, TN]
    x, y, z = geo[0:1, :], geo[1:2, :], geo[2:3, :]
    lab = geo[3:4, :]

    mask_rows = []    # per-plane geometry mask rows ([1, TN]) for the output
    lhs_rows = []     # on/off rows -> [2K, TN] matmul LHS
    for k in range(K):
        p = i_p * K + k
        cx, cy, cz = meta_ref[p, 0], meta_ref[p, 1], meta_ref[p, 2]
        nx, ny, nz = meta_ref[p, 3], meta_ref[p, 4], meta_ref[p, 5]
        s00, s01, s02 = meta_ref[p, 6], meta_ref[p, 7], meta_ref[p, 8]
        s10, s11, s12 = meta_ref[p, 9], meta_ref[p, 10], meta_ref[p, 11]
        lo0, hi0 = meta_ref[p, 12], meta_ref[p, 13]
        lo1, hi1 = meta_ref[p, 14], meta_ref[p, 15]
        plab = meta_ref[p, 16]

        # |(point - center) . normal| < 0.1  AND  axis-aligned range test on
        # the two active axes (one-hot selected columns).
        dist = jnp.abs((x - cx) * nx + (y - cy) * ny + (z - cz) * nz)
        c0 = x * s00 + y * s01 + z * s02
        c1 = x * s10 + y * s11 + z * s12
        inrange = (c0 >= lo0) & (c0 < hi0) & (c1 >= lo1) & (c1 < hi1)
        m = jnp.logical_and(dist < DIST_THRESH, inrange).astype(jnp.float32)
        on = m * (lab == plab).astype(jnp.float32)
        off = m - on
        mask_rows.append(m)
        lhs_rows += [on, off]

    mask_ref[...] = jnp.concatenate(mask_rows, axis=0)[None]        # [1,K,TN]
    lhs = jnp.concatenate(lhs_rows, axis=0)                         # [2K, TN]

    # Subset selection inside the matmul LHS; point-axis sums on the MXU.
    den_p = jnp.dot(lhs, e_scr[...], preferred_element_type=jnp.float32)
    num_p = jnp.dot(lhs, eh_scr[...], preferred_element_type=jnp.float32)

    @pl.when(i_n == 0)
    def _():
        den_acc[i_p] = den_p
        num_acc[i_p] = num_p

    @pl.when(i_n != 0)
    def _():
        den_acc[i_p] = den_acc[i_p] + den_p
        num_acc[i_p] = num_acc[i_p] + num_p

    @pl.when(i_n == n_n - 1)
    def _():
        den = den_acc[i_p]                                          # [2K, C]
        num = num_acc[i_p]
        f_agg = num * pl.reciprocal(jnp.maximum(den, 1e-20), approx=True)
        out = jnp.dot(f_agg, wmlp_ref[...], preferred_element_type=jnp.float32)
        out = jnp.maximum(out + bmlp_ref[...], 0.0)                 # [2K, C]
        # Empty subsets (den == 0) produce zeros (module never pools them).
        out = out * (den > 0.0).astype(jnp.float32)
        pool_ref[...] = out[None]                                   # [1,2K,C]


# -----------------------------------------------------------------------------
# Wrapper
# -----------------------------------------------------------------------------
def plane_refine_pallas(feat_nc, clouds, labels, plane_meta, params, *,
                        n_tile=128, k_planes=2):
    """feat_nc: [N,C], clouds: [N,3], labels: [N,1], plane_meta: [P,17].

    Returns (mask [P,N] f32, on_feat [P,C], off_feat [P,C])."""
    N, C = feat_nc.shape
    P = plane_meta.shape[0]
    K = k_planes

    # Pad plane table to a multiple of K. Zero rows give empty masks (the
    # range test 0 <= c < 0 is always false); outputs are sliced back to P.
    P_pad = ((P + K - 1) // K) * K
    if P_pad != P:
        plane_meta = jnp.concatenate(
            [plane_meta,
             jnp.zeros((P_pad - P, plane_meta.shape[1]), plane_meta.dtype)], 0)
    PB = P_pad // K

    # n_tile must divide N, be a multiple of 8 (sublanes) and 128 (lanes).
    if N % n_tile != 0 or n_tile % 128 != 0:
        n_tile = N
    nN = N // n_tile

    # Host-side folds (traced once): eval-mode BN scale into the conv weights.
    w1 = params["w1"] * params["s1"]
    w2 = params["w2"] * params["s2"]
    b1, b2 = params["b1"], params["b2"]
    watt, wmlp, bmlp = params["watt"], params["wmlp"], params["bmlp"]

    # Lane-dense geometry + labels ([4, N], points on lanes).  The lane-sparse
    # [N,4] column layout of v1 is gone (subset selection now lives in the
    # matmul LHS).
    geo_rows = jnp.transpose(jnp.concatenate([clouds, labels], axis=1))  # [4,N]

    # --- Kernel A: point MLP, tiled over N, megacore-parallel ---------------
    h, att, tmax = pl.pallas_call(
        _point_mlp_kernel,
        out_shape=(jax.ShapeDtypeStruct((N, C), jnp.float32),
                   jax.ShapeDtypeStruct((N, C), jnp.float32),
                   jax.ShapeDtypeStruct((nN, 1, C), jnp.float32)),
        grid_spec=pltpu.PrefetchScalarGridSpec(
            num_scalar_prefetch=0, grid=(nN,),
            in_specs=[pl.BlockSpec((n_tile, C), lambda i: (i, 0)),
                      pl.BlockSpec((C, C), lambda i: (0, 0)),
                      pl.BlockSpec((1, C), lambda i: (0, 0)),
                      pl.BlockSpec((C, C), lambda i: (0, 0)),
                      pl.BlockSpec((1, C), lambda i: (0, 0)),
                      pl.BlockSpec((C, C), lambda i: (0, 0))],
            out_specs=(pl.BlockSpec((n_tile, C), lambda i: (i, 0)),
                       pl.BlockSpec((n_tile, C), lambda i: (i, 0)),
                       pl.BlockSpec((1, 1, C), lambda i: (i, 0, 0)))),
        compiler_params=pltpu.CompilerParams(
            dimension_semantics=("parallel",)),
    )(feat_nc, w1, b1, w2, b2, watt)

    # Room-wide per-channel max of att (tiny [nN,1,C] -> [1,C] XLA reduce);
    # the shift constant cancels in the softmax ratio, it only guards exp.
    gmax = jnp.max(tmax, axis=0)                                     # [1, C]

    # --- Kernel B: masks + masked attention pooling --------------------------
    masks, pooled = pl.pallas_call(
        functools.partial(_plane_pool_kernel, k_planes=K),
        out_shape=(jax.ShapeDtypeStruct((PB, K, N), jnp.float32),
                   jax.ShapeDtypeStruct((PB, 2 * K, C), jnp.float32)),
        grid_spec=pltpu.PrefetchScalarGridSpec(
            num_scalar_prefetch=0, grid=(nN, PB),
            in_specs=[
                pl.BlockSpec(memory_space=pltpu.MemorySpace.SMEM),    # meta
                pl.BlockSpec((4, n_tile), lambda n, p: (0, n)),       # geo rows
                pl.BlockSpec((n_tile, C), lambda n, p: (n, 0)),       # h
                pl.BlockSpec((n_tile, C), lambda n, p: (n, 0)),       # att
                pl.BlockSpec((1, C), lambda n, p: (0, 0)),            # gmax
                pl.BlockSpec((C, C), lambda n, p: (0, 0)),            # wmlp
                pl.BlockSpec((1, C), lambda n, p: (0, 0)),            # bmlp
            ],
            out_specs=(pl.BlockSpec((1, K, n_tile), lambda n, p: (p, 0, n)),
                       pl.BlockSpec((1, 2 * K, C), lambda n, p: (p, 0, 0))),
            scratch_shapes=[pltpu.VMEM((n_tile, C), jnp.float32),      # e
                            pltpu.VMEM((n_tile, C), jnp.float32),      # e*h
                            pltpu.VMEM((PB, 2 * K, C), jnp.float32),   # den acc
                            pltpu.VMEM((PB, 2 * K, C), jnp.float32)]), # num acc
        compiler_params=pltpu.CompilerParams(
            # N axis carries the accumulator -> sequential; plane axis could be
            # made a leading "parallel" axis with per-core accumulators (v7x).
            dimension_semantics=("arbitrary", "arbitrary")),
    )(plane_meta, geo_rows, h, att, gmax, wmlp, bmlp)

    masks = masks.reshape(P_pad, N)[:P]                              # [P, N]
    pooled = pooled.reshape(P_pad, 2, C)[:P]                         # [P, 2, C]
    return masks, pooled[:, 0, :], pooled[:, 1, :]


# ------------------------- host-side glue ------------------------------------

def build_plane_meta(planes):
    rows = []
    for p in planes:
        center = np.asarray(p["center"], np.float32)
        normal = np.asarray(p["normal"], np.float32)
        xyz_min = np.asarray(p["xyz_min"], np.float32)
        xyz_max = np.asarray(p["xyz_max"], np.float32)
        arange = np.where(xyz_max != 0)[0]
        a0, a1 = int(arange[0]), int(arange[1])
        sel0 = np.eye(3, dtype=np.float32)[a0]
        sel1 = np.eye(3, dtype=np.float32)[a1]
        row = np.concatenate([
            center, normal, sel0, sel1,
            np.array([xyz_min[a0], xyz_max[a0], xyz_min[a1], xyz_max[a1]],
                     np.float32),
            np.array([p["label"]], np.float32),
        ])
        rows.append(row.astype(np.float32))
    return np.stack(rows)   # [P, 17]


def assemble_room_result(masks, on_feats, off_feats, labels, plane_labels):
    """Mimics get_nearby_plane_points list building from the kernel outputs."""
    N = masks.shape[1]
    idx = np.arange(N)
    res = {"on_plane_idx_list": [], "off_plane_idx_list": [],
           "on_plane_feature_list": [], "off_plane_feature_list": [],
           "plane_result_list": [], "mask": []}
    for p in range(masks.shape[0]):
        m = masks[p]
        idx_temp = idx[m]
        if len(idx_temp) > 1:
            res["mask"].append(m)
            lab = labels[m]
            mask_1 = lab == plane_labels[p]
            mask_2 = lab != plane_labels[p]
            if mask_1.sum() != 0:
                res["on_plane_idx_list"].append(idx_temp[mask_1])
                res["on_plane_feature_list"].append(
                    on_feats[p].reshape(1, -1, 1, 1))   # PyTorch [1,C,1,1]
            else:
                res["on_plane_idx_list"].append([])
                res["on_plane_feature_list"].append([])
            if mask_2.sum() != 0:
                res["off_plane_idx_list"].append(idx_temp[mask_2])
                res["off_plane_feature_list"].append(
                    off_feats[p].reshape(1, -1, 1, 1))
            else:
                res["off_plane_idx_list"].append([])
                res["off_plane_feature_list"].append([])
    return res


# ------------------------- numpy reference (verification) --------------------

def _ref_att_pool(h, pn):
    att = h @ pn["watt"]
    att = att - att.max(axis=0, keepdims=True)
    e = np.exp(att)
    sc = e / e.sum(axis=0, keepdims=True)
    f = (h * sc).sum(axis=0, keepdims=True)
    return np.maximum(f @ pn["wmlp"] + pn["bmlp"], 0.0)   # [1, C]


def reference_room(feat_nc, clouds, labels, planes, pn):
    out = []
    for p in planes:
        center = np.asarray(p["center"], np.float32)
        normal = np.asarray(p["normal"], np.float32)
        xyz_min = np.asarray(p["xyz_min"], np.float32)
        xyz_max = np.asarray(p["xyz_max"], np.float32)
        ar = np.where(xyz_max != 0)[0]
        a0, a1 = int(ar[0]), int(ar[1])
        x, y, z = clouds[:, 0], clouds[:, 1], clouds[:, 2]
        dist = np.abs((x - center[0]) * normal[0] + (y - center[1]) * normal[1]
                      + (z - center[2]) * normal[2])
        rng = ((clouds[:, a0] >= xyz_min[a0]) & (clouds[:, a0] < xyz_max[a0]) &
               (clouds[:, a1] >= xyz_min[a1]) & (clouds[:, a1] < xyz_max[a1]))
        mask = (dist < DIST_THRESH) & rng
        entry = {"mask": mask, "on": None, "off": None}
        if mask.sum() > 1:
            sub = feat_nc[mask]
            h = np.maximum((sub @ pn["w1"]) * pn["s1"] + pn["b1"], 0.0)
            h = np.maximum((h @ pn["w2"]) * pn["s2"] + pn["b2"], 0.0)
            lab = labels[mask]
            on = lab == p["label"]
            off = ~on
            if on.sum():
                entry["on"] = _ref_att_pool(h[on], pn)
            if off.sum():
                entry["off"] = _ref_att_pool(h[off], pn)
        out.append(entry)
    return out


# ------------------------------ main ------------------------------------------

if __name__ == "__main__":
    N, C, P, n_rooms = 256, 32, 4, 2

    key = jax.random.PRNGKey(0)
    ks = jax.random.split(key, 16)

    def w(k, shape, scale=0.1):
        return scale * jax.random.normal(k, shape, jnp.float32)

    params = {
        "w1": w(ks[0], (C, C)),
        "s1": 1.0 + 0.1 * jax.random.normal(ks[1], (1, C), jnp.float32),
        "b1": w(ks[2], (1, C)),
        "w2": w(ks[3], (C, C)),
        "s2": 1.0 + 0.1 * jax.random.normal(ks[4], (1, C), jnp.float32),
        "b2": w(ks[5], (1, C)),
        "watt": w(ks[6], (C, C)),
        "wmlp": w(ks[7], (C, C)),
        "bmlp": w(ks[8], (1, C)),
    }
    params_np = {k: np.asarray(v) for k, v in params.items()}

    # synthetic room inputs (PyTorch-side shapes: feature NCHW [B,C,N,1])
    feature_nchw = 0.5 * jax.random.normal(ks[9], (n_rooms, C, N, 1), jnp.float32)
    xyz = jax.random.uniform(ks[10], (n_rooms, N, 3), jnp.float32, -0.5, 0.5)
    centers = jnp.full((n_rooms, 3), 0.5, jnp.float32)
    point_labels = jax.random.randint(ks[11], (n_rooms, N), 0, 3)

    # synthetic plane tables (replaces pd.read_csv of plane CSVs)
    planes = [
        dict(center=[0.5, 0.5, 0.45], normal=[0.0, 0.0, 1.0],
             xyz_min=[0.0, 0.0, 0.0], xyz_max=[1.0, 1.0, 0.0], label=1.0),
        dict(center=[0.5, 0.30, 0.5], normal=[0.0, 1.0, 0.0],
             xyz_min=[0.0, 0.0, 0.0], xyz_max=[1.0, 0.0, 1.0], label=2.0),
        dict(center=[0.7, 0.5, 0.5], normal=[1.0, 0.0, 0.0],
             xyz_min=[0.0, 0.0, 0.0], xyz_max=[0.0, 1.0, 1.0], label=0.0),
        dict(center=[0.5, 0.5, 0.8], normal=[0.0, 0.0, 1.0],
             xyz_min=[0.1, 0.1, 0.0], xyz_max=[0.9, 0.9, 0.0], label=1.0),
    ]
    plane_meta = jnp.asarray(build_plane_meta(planes))
    plane_labels = np.array([p["label"] for p in planes], np.float32)

    room_list = []
    for r in range(n_rooms):
        room_clouds = xyz[r] + centers[r]                        # [N, 3]
        feat_nc = jnp.transpose(feature_nchw[r, :, :, 0])        # [N, C]
        labels_f = point_labels[r].astype(jnp.float32)[:, None]  # [N, 1]

        masks_k, on_k, off_k = plane_refine_pallas(
            feat_nc, room_clouds, labels_f, plane_meta, params,
            n_tile=128, k_planes=2)
        jax.block_until_ready((masks_k, on_k, off_k))

        masks_np = np.asarray(masks_k) > 0.5                     # [P, N]
        on_np = np.asarray(on_k)                                 # [P, C]
        off_np = np.asarray(off_k)                               # [P, C]
        labels_np = np.asarray(point_labels[r]).astype(np.float32)

        # verify against a pure-numpy reference of the gathered-subset pipeline
        ref = reference_room(np.asarray(feat_nc), np.asarray(room_clouds),
                             labels_np, planes, params_np)
        for p in range(P):
            assert np.array_equal(masks_np[p], ref[p]["mask"]), "mask mismatch"
            if ref[p]["on"] is not None:
                assert np.allclose(on_np[p], ref[p]["on"][0],
                                   rtol=5e-3, atol=5e-3), "on-plane mismatch"
            if ref[p]["off"] is not None:
                assert np.allclose(off_np[p], ref[p]["off"][0],
                                   rtol=5e-3, atol=5e-3), "off-plane mismatch"

        room_list.append(assemble_room_result(
            masks_np, on_np, off_np, labels_np, plane_labels))

    assert len(room_list) == n_rooms
    assert len(room_list[0]["mask"]) > 0
    print("KERNEL_OK")
</pallas_src>

<mosaic_0001>
module attributes {stable_mosaic.version = 11 : i64} {
  func.func @_point_mlp_kernel(%arg0: i32, %arg1: memref<128x32xf32, #tpu.memory_space<vmem>>, %arg2: memref<32x32xf32, #tpu.memory_space<vmem>>, %arg3: memref<1x32xf32, #tpu.memory_space<vmem>>, %arg4: memref<32x32xf32, #tpu.memory_space<vmem>>, %arg5: memref<1x32xf32, #tpu.memory_space<vmem>>, %arg6: memref<32x32xf32, #tpu.memory_space<vmem>>, %arg7: memref<128x32xf32, #tpu.memory_space<vmem>>, %arg8: memref<128x32xf32, #tpu.memory_space<vmem>>, %arg9: memref<1x1x32xf32, #tpu.memory_space<vmem>>) attributes {dimension_semantics = [#tpu.dimension_semantics<parallel>], iteration_bounds = array<i64: 2>, scalar_prefetch = 0 : i64, scratch_operands = 0 : i64, tpu.core_type = #tpu.core_type<tc>, window_params = [{transform_indices = @transform_0, window_bounds = array<i64: 128, 32>}, {pipeline_mode = #tpu.pipeline_mode<synchronous>, transform_indices = @transform_1, window_bounds = array<i64: 32, 32>}, {pipeline_mode = #tpu.pipeline_mode<synchronous>, transform_indices = @transform_2, window_bounds = array<i64: 1, 32>}, {pipeline_mode = #tpu.pipeline_mode<synchronous>, transform_indices = @transform_3, window_bounds = array<i64: 32, 32>}, {pipeline_mode = #tpu.pipeline_mode<synchronous>, transform_indices = @transform_4, window_bounds = array<i64: 1, 32>}, {pipeline_mode = #tpu.pipeline_mode<synchronous>, transform_indices = @transform_5, window_bounds = array<i64: 32, 32>}, {transform_indices = @transform_6, window_bounds = array<i64: 128, 32>}, {transform_indices = @transform_7, window_bounds = array<i64: 128, 32>}, {transform_indices = @transform_8, window_bounds = array<i64: 1, 1, 32>}]} {
    %c0 = arith.constant 0 : index
    %c0_0 = arith.constant 0 : index
    %0 = vector.load %arg1[%c0, %c0_0] : memref<128x32xf32, #tpu.memory_space<vmem>>, vector<128x32xf32>
    %c0_1 = arith.constant 0 : index
    %c0_2 = arith.constant 0 : index
    %1 = vector.load %arg2[%c0_1, %c0_2] : memref<32x32xf32, #tpu.memory_space<vmem>>, vector<32x32xf32>
    %cst = arith.constant dense<0.000000e+00> : vector<128x32xf32>
    %2 = tpu.matmul %0, %1, %cst {dimension_numbers = #tpu.dot_dimension_numbers<[1], [0], [0], [1], [0, 0, 1, 1], [], []>} : vector<128x32xf32>, vector<32x32xf32>, vector<128x32xf32> -> vector<128x32xf32>
    %c0_3 = arith.constant 0 : index
    %c0_4 = arith.constant 0 : index
    %3 = vector.load %arg3[%c0_3, %c0_4] : memref<1x32xf32, #tpu.memory_space<vmem>>, vector<1x32xf32>
    %4 = vector.broadcast %3 : vector<1x32xf32> to vector<128x32xf32>
    %5 = arith.addf %2, %4 : vector<128x32xf32>
    %cst_5 = arith.constant 0.000000e+00 : f32
    %6 = vector.broadcast %cst_5 : f32 to vector<128x32xf32>
    %7 = arith.maximumf %5, %6 : vector<128x32xf32>
    %c0_6 = arith.constant 0 : index
    %c0_7 = arith.constant 0 : index
    %8 = vector.load %arg4[%c0_6, %c0_7] : memref<32x32xf32, #tpu.memory_space<vmem>>, vector<32x32xf32>
    %cst_8 = arith.constant dense<0.000000e+00> : vector<128x32xf32>
    %9 = tpu.matmul %7, %8, %cst_8 {dimension_numbers = #tpu.dot_dimension_numbers<[1], [0], [0], [1], [0, 0, 1, 1], [], []>} : vector<128x32xf32>, vector<32x32xf32>, vector<128x32xf32> -> vector<128x32xf32>
    %c0_9 = arith.constant 0 : index
    %c0_10 = arith.constant 0 : index
    %10 = vector.load %arg5[%c0_9, %c0_10] : memref<1x32xf32, #tpu.memory_space<vmem>>, vector<1x32xf32>
    %11 = vector.broadcast %10 : vector<1x32xf32> to vector<128x32xf32>
    %12 = arith.addf %9, %11 : vector<128x32xf32>
    %cst_11 = arith.constant 0.000000e+00 : f32
    %13 = vector.broadcast %cst_11 : f32 to vector<128x32xf32>
    %14 = arith.maximumf %12, %13 : vector<128x32xf32>
    %c0_12 = arith.constant 0 : index
    %c0_13 = arith.constant 0 : index
    %15 = vector.load %arg6[%c0_12, %c0_13] : memref<32x32xf32, #tpu.memory_space<vmem>>, vector<32x32xf32>
    %cst_14 = arith.constant dense<0.000000e+00> : vector<128x32xf32>
    %16 = tpu.matmul %14, %15, %cst_14 {dimension_numbers = #tpu.dot_dimension_numbers<[1], [0], [0], [1], [0, 0, 1, 1], [], []>} : vector<128x32xf32>, vector<32x32xf32>, vector<128x32xf32> -> vector<128x32xf32>
    %c0_15 = arith.constant 0 : index
    %c0_16 = arith.constant 0 : index
    %17 = vector.load %arg7[%c0_15, %c0_16] : memref<128x32xf32, #tpu.memory_space<vmem>>, vector<128x32xf32>
    tpu.vector_store %arg7[%c0_15, %c0_16], %14 {strides = array<i32>} : memref<128x32xf32, #tpu.memory_space<vmem>>, vector<128x32xf32>,
    %c0_17 = arith.constant 0 : index
    %c0_18 = arith.constant 0 : index
    %18 = vector.load %arg8[%c0_17, %c0_18] : memref<128x32xf32, #tpu.memory_space<vmem>>, vector<128x32xf32>
    tpu.vector_store %arg8[%c0_17, %c0_18], %16 {strides = array<i32>} : memref<128x32xf32, #tpu.memory_space<vmem>>, vector<128x32xf32>,
    %cst_19 = arith.constant dense<0xFF800000> : vector<32xf32>
    %19 = vector.multi_reduction <maximumf>, %16, %cst_19 [0] : vector<128x32xf32> to vector<32xf32>
    %20 = vector.shape_cast %19 : vector<32xf32> to vector<1x32xf32>
    %21 = vector.shape_cast %20 : vector<1x32xf32> to vector<1x1x32xf32>
    %c0_20 = arith.constant 0 : index
    %c0_21 = arith.constant 0 : index
    %c0_22 = arith.constant 0 : index
    %22 = vector.load %arg9[%c0_20, %c0_21, %c0_22] : memref<1x1x32xf32, #tpu.memory_space<vmem>>, vector<1x1x32xf32>
    tpu.vector_store %arg9[%c0_20, %c0_21, %c0_22], %21 {strides = array<i32>} : memref<1x1x32xf32, #tpu.memory_space<vmem>>, vector<1x1x32xf32>,
    return
  }
  func.func @transform_0(%arg0: i32) -> (i32, i32) {
    %c0_i32 = arith.constant 0 : i32
    %c0_i32_0 = arith.constant 0 : i32
    return %arg0, %c0_i32 : i32, i32
  }
  func.func @transform_1(%arg0: i32) -> (i32, i32) {
    %c0_i32 = arith.constant 0 : i32
    %c0_i32_0 = arith.constant 0 : i32
    %c0_i32_1 = arith.constant 0 : i32
    return %c0_i32, %c0_i32_0 : i32, i32
  }
  func.func @transform_2(%arg0: i32) -> (i32, i32) {
    %c0_i32 = arith.constant 0 : i32
    %c0_i32_0 = arith.constant 0 : i32
    %c0_i32_1 = arith.constant 0 : i32
    return %c0_i32, %c0_i32_0 : i32, i32
  }
  func.func @transform_3(%arg0: i32) -> (i32, i32) {
    %c0_i32 = arith.constant 0 : i32
    %c0_i32_0 = arith.constant 0 : i32
    %c0_i32_1 = arith.constant 0 : i32
    return %c0_i32, %c0_i32_0 : i32, i32
  }
  func.func @transform_4(%arg0: i32) -> (i32, i32) {
    %c0_i32 = arith.constant 0 : i32
    %c0_i32_0 = arith.constant 0 : i32
    %c0_i32_1 = arith.constant 0 : i32
    return %c0_i32, %c0_i32_0 : i32, i32
  }
  func.func @transform_5(%arg0: i32) -> (i32, i32) {
    %c0_i32 = arith.constant 0 : i32
    %c0_i32_0 = arith.constant 0 : i32
    %c0_i32_1 = arith.constant 0 : i32
    return %c0_i32, %c0_i32_0 : i32, i32
  }
  func.func @transform_6(%arg0: i32) -> (i32, i32) {
    %c0_i32 = arith.constant 0 : i32
    %c0_i32_0 = arith.constant 0 : i32
    return %arg0, %c0_i32 : i32, i32
  }
  func.func @transform_7(%arg0: i32) -> (i32, i32) {
    %c0_i32 = arith.constant 0 : i32
    %c0_i32_0 = arith.constant 0 : i32
    return %arg0, %c0_i32 : i32, i32
  }
  func.func @transform_8(%arg0: i32) -> (i32, i32, i32) {
    %c0_i32 = arith.constant 0 : i32
    %c0_i32_0 = arith.constant 0 : i32
    %c0_i32_1 = arith.constant 0 : i32
    return %arg0, %c0_i32, %c0_i32_0 : i32, i32, i32
  }
}

</mosaic_0001>

<llo_original>
// kernel: tpu_custom_call.1
$region0: #{tpu_custom_call.1}
  #allocation0 [shape = 'u32[]', space=smem, size = 0x4, offset = 0x4, fixed_abs, tag = 'smem constant byte address 0x4 - core index']
  #allocation1 [shape = 'u32[72,128]{1,0:T(1,128)}', space=vmem, size = 0x9000, scoped, tag = 'internal scratch']
  %s0 = inlined_call_operand.vmem [shape: f32[256,32], index: 0, kind: input, shape index: {}]
  %s1 = inlined_call_operand.vmem [shape: f32[32,32], index: 1, kind: input, shape index: {}]
  %s2 = inlined_call_operand.vmem [shape: f32[1,32], index: 2, kind: input, shape index: {}]
  %s3 = inlined_call_operand.vmem [shape: f32[32,32], index: 3, kind: input, shape index: {}]
  %s4 = inlined_call_operand.vmem [shape: f32[1,32], index: 4, kind: input, shape index: {}]
  %s5 = inlined_call_operand.vmem [shape: f32[32,32], index: 5, kind: input, shape index: {}]
  %s6 = inlined_call_operand.vmem [shape: f32[256,32], index: 6, kind: output, shape index: {0}]
  %s7 = inlined_call_operand.vmem [shape: f32[256,32], index: 7, kind: output, shape index: {1}]
  %s8 = inlined_call_operand.hbm [shape: f32[2,1,32], index: 8, kind: output, shape index: {2}]
  %9 = xla_tuple %s6, %s7, %s8
  %s10 = sld [smem:[#allocation0]]
  $region73: #{tpu_custom_call.1} parent=0
    _
  %s12 = ssub.s32 1, %s10
  %s13 = scalar_select 0, %s12, %s10
  $region1: #{tpu_custom_call.1} parent=0
    #allocation2 [shape = 'u8[1024]{0}', space=vmem, size = 0x400, scoped, tag = 'output window, operand 2']
    #allocation3 [shape = 's32[2]{0}', space=sflag, size = 0x8, scoped, tag = 'scoped memory for tpu_custom_call.1']
    %14 = vsyncpa [#allocation3], 0
    %s15 = scalar_lea.sflag [#allocation3], 1
    %16 = vsyncpa %s15, 0
    loop: start=0, step=1, limit=4
    $region2: #{tpu_custom_call.1} parent=1 // loop_pre_header
      _
    $region3: #{tpu_custom_call.1} parent=1 // loop_header
      %s18 = sphi 0, %s22
      %p19 = scmp.ge.s32.totalorder %s18, 4
      %s28 = sphi 0, %s30
      %s31 = sphi 0, %s28
      %s32 = sphi 0, %s31
      %s48 = sphi 0, %s32
      %s52 = sphi 0, %s52
      %s54 = sphi 0, %s52
      %s55 = sphi 0, %s54
      %s69 = sphi 0, %s55
      %s73 = sphi 0, %s73
      %s75 = sphi 0, %s73
      %s76 = sphi 0, %s75
      %s90 = sphi 0, %s76
      %s94 = sphi 0, %s94
      %s96 = sphi 0, %s94
      %s97 = sphi 0, %s96
      %s111 = sphi 0, %s97
      %s115 = sphi 0, %s115
      %s117 = sphi 0, %s115
      %s118 = sphi 0, %s117
      %s132 = sphi 0, %s118
      %s136 = sphi 0, %s136
      %s138 = sphi 0, %s136
      %s139 = sphi 0, %s138
      %s153 = sphi 0, %s139
      %s159 = sphi 0, %s161
      %s162 = sphi 0, %s159
      %s163 = sphi 0, %s162
      %s179 = sphi 0, %s163
      %s185 = sphi 0, %s187
      %s188 = sphi 0, %s185
      %s189 = sphi 0, %s188
      %s205 = sphi 0, %s189
      %s211 = sphi 0, %s213
      %s214 = sphi 0, %s211
      %s215 = sphi 0, %s214
      %s231 = sphi 0, %s215
    $region4: #{tpu_custom_call.1} parent=1 // loop_header_branch
      %21 = sbr.rel (%p19) target = $region8
    $region5: #{tpu_custom_call.1} parent=1 // loop_body
      %s23 = ssub.s32 %s18, 1
      %s24 = ssub.s32 %s18, 2
      %s25 = sadd.s32 %s18, 1
      %s26 = ssub.s32 %s18, %s25
      %p27 = scmp.eq.s32.totalorder %s26, 0
      %s29 = sadd.s32 %s28, 1
      %s30 = scalar_select %p27, %s28, %s29
      %p33 = pneg %p27
      %p34 = scmp.eq.s32.totalorder %s18, 1
      %p35 = por %p33, %p34
      %p36 = scmp.ne.s32.totalorder %s28, %s31
      %p37 = scmp.eq.s32.totalorder %s18, 0
      %p38 = por %p36, %p37
      %p39 = scmp.ne.s32.totalorder %s28, %s31
      %p40 = scmp.eq.s32.totalorder %s23, 1
      %p41 = por %p39, %p40
      %p42 = scmp.ne.s32.totalorder %s31, %s32
      %p43 = scmp.eq.s32.totalorder %s23, 0
      %p44 = por %p42, %p43
      %p45 = scmp.ne.s32.totalorder %s31, %s32
      %p46 = scmp.eq.s32.totalorder %s24, 1
      %p47 = por %p45, %p46
      %p49 = scmp.ne.s32.totalorder %s32, %s48
      %p50 = scmp.eq.s32.totalorder %s24, 0
      %p51 = por %p49, %p50
      %s53 = sadd.s32 %s52, 1
      %p56 = scmp.eq.s32.totalorder %s18, 1
      %p57 = scmp.ne.s32.totalorder %s52, %s54
      %p58 = scmp.eq.s32.totalorder %s18, 0
      %p59 = por %p57, %p58
      %p60 = scmp.ne.s32.totalorder %s52, %s54
      %p61 = scmp.eq.s32.totalorder %s23, 1
      %p62 = por %p60, %p61
      %p63 = scmp.ne.s32.totalorder %s54, %s55
      %p64 = scmp.eq.s32.totalorder %s23, 0
      %p65 = por %p63, %p64
      %p66 = scmp.ne.s32.totalorder %s54, %s55
      %p67 = scmp.eq.s32.totalorder %s24, 1
      %p68 = por %p66, %p67
      %p70 = scmp.ne.s32.totalorder %s55, %s69
      %p71 = scmp.eq.s32.totalorder %s24, 0
      %p72 = por %p70, %p71
      %s74 = sadd.s32 %s73, 1
      %p77 = scmp.eq.s32.totalorder %s18, 1
      %p78 = scmp.ne.s32.totalorder %s73, %s75
      %p79 = scmp.eq.s32.totalorder %s18, 0
      %p80 = por %p78, %p79
      %p81 = scmp.ne.s32.totalorder %s73, %s75
      %p82 = scmp.eq.s32.totalorder %s23, 1
      %p83 = por %p81, %p82
      %p84 = scmp.ne.s32.totalorder %s75, %s76
      %p85 = scmp.eq.s32.totalorder %s23, 0
      %p86 = por %p84, %p85
      %p87 = scmp.ne.s32.totalorder %s75, %s76
      %p88 = scmp.eq.s32.totalorder %s24, 1
      %p89 = por %p87, %p88
      %p91 = scmp.ne.s32.totalorder %s76, %s90
      %p92 = scmp.eq.s32.totalorder %s24, 0
      %p93 = por %p91, %p92
      %s95 = sadd.s32 %s94, 1
      %p98 = scmp.eq.s32.totalorder %s18, 1
      %p99 = scmp.ne.s32.totalorder %s94, %s96
      %p100 = scmp.eq.s32.totalorder %s18, 0
      %p101 = por %p99, %p100
      %p102 = scmp.ne.s32.totalorder %s94, %s96
      %p103 = scmp.eq.s32.totalorder %s23, 1
      %p104 = por %p102, %p103
      %p105 = scmp.ne.s32.totalorder %s96, %s97
      %p106 = scmp.eq.s32.totalorder %s23, 0
      %p107 = por %p105, %p106
      %p108 = scmp.ne.s32.totalorder %s96, %s97
      %p109 = scmp.eq.s32.totalorder %s24, 1
      %p110 = por %p108, %p109
      %p112 = scmp.ne.s32.totalorder %s97, %s111
      %p113 = scmp.eq.s32.totalorder %s24, 0
      %p114 = por %p112, %p113
      %s116 = sadd.s32 %s115, 1
      %p119 = scmp.eq.s32.totalorder %s18, 1
      %p120 = scmp.ne.s32.totalorder %s115, %s117
      %p121 = scmp.eq.s32.totalorder %s18, 0
      %p122 = por %p120, %p121
      %p123 = scmp.ne.s32.totalorder %s115, %s117
      %p124 = scmp.eq.s32.totalorder %s23, 1
      %p125 = por %p123, %p124
      %p126 = scmp.ne.s32.totalorder %s117, %s118
      %p127 = scmp.eq.s32.totalorder %s23, 0
      %p128 = por %p126, %p127
      %p129 = scmp.ne.s32.totalorder %s117, %s118
      %p130 = scmp.eq.s32.totalorder %s24, 1
      %p131 = por %p129, %p130
      %p133 = scmp.ne.s32.totalorder %s118, %s132
      %p134 = scmp.eq.s32.totalorder %s24, 0
      %p135 = por %p133, %p134
      %s137 = sadd.s32 %s136, 1
      %p140 = scmp.eq.s32.totalorder %s18, 1
      %p141 = scmp.ne.s32.totalorder %s136, %s138
      %p142 = scmp.eq.s32.totalorder %s18, 0
      %p143 = por %p141, %p142
      %p144 = scmp.ne.s32.totalorder %s136, %s138
      %p145 = scmp.eq.s32.totalorder %s23, 1
      %p146 = por %p144, %p145
      %p147 = scmp.ne.s32.totalorder %s138, %s139
      %p148 = scmp.eq.s32.totalorder %s23, 0
      %p149 = por %p147, %p148
      %p150 = scmp.ne.s32.totalorder %s138, %s139
      %p151 = scmp.eq.s32.totalorder %s24, 1
      %p152 = por %p150, %p151
      %p154 = scmp.ne.s32.totalorder %s139, %s153
      %p155 = scmp.eq.s32.totalorder %s24, 0
      %p156 = por %p154, %p155
      %s157 = ssub.s32 %s18, %s25
      %p158 = scmp.eq.s32.totalorder %s157, 0
      %s160 = sadd.s32 %s159, 1
      %s161 = scalar_select %p158, %s159, %s160
      %p164 = pneg %p158
      %p165 = scmp.eq.s32.totalorder %s18, 1
      %p166 = por %p164, %p165
      %p167 = scmp.ne.s32.totalorder %s159, %s162
      %p168 = scmp.eq.s32.totalorder %s18, 0
      %p169 = por %p167, %p168
      %p170 = scmp.ne.s32.totalorder %s159, %s162
      %p171 = scmp.eq.s32.totalorder %s23, 1
      %p172 = por %p170, %p171
      %p173 = scmp.ne.s32.totalorder %s162, %s163
      %p174 = scmp.eq.s32.totalorder %s23, 0
      %p175 = por %p173, %p174
      %p176 = scmp.ne.s32.totalorder %s162, %s163
      %p177 = scmp.eq.s32.totalorder %s24, 1
      %p178 = por %p176, %p177
      %p180 = scmp.ne.s32.totalorder %s163, %s179
      %p181 = scmp.eq.s32.totalorder %s24, 0
      %p182 = por %p180, %p181
      %s183 = ssub.s32 %s18, %s25
      %p184 = scmp.eq.s32.totalorder %s183, 0
      %s186 = sadd.s32 %s185, 1
      %s187 = scalar_select %p184, %s185, %s186
      %p190 = pneg %p184
      %p191 = scmp.eq.s32.totalorder %s18, 1
      %p192 = por %p190, %p191
      %p193 = scmp.ne.s32.totalorder %s185, %s188
      %p194 = scmp.eq.s32.totalorder %s18, 0
      %p195 = por %p193, %p194
      %p196 = scmp.ne.s32.totalorder %s185, %s188
      %p197 = scmp.eq.s32.totalorder %s23, 1
      %p198 = por %p196, %p197
      %p199 = scmp.ne.s32.totalorder %s188, %s189
      %p200 = scmp.eq.s32.totalorder %s23, 0
      %p201 = por %p199, %p200
      %p202 = scmp.ne.s32.totalorder %s188, %s189
      %p203 = scmp.eq.s32.totalorder %s24, 1
      %p204 = por %p202, %p203
      %p206 = scmp.ne.s32.totalorder %s189, %s205
      %p207 = scmp.eq.s32.totalorder %s24, 0
      %p208 = por %p206, %p207
      %s209 = ssub.s32 %s18, %s25
      %p210 = scmp.eq.s32.totalorder %s209, 0
      %s212 = sadd.s32 %s211, 1
      %s213 = scalar_select %p210, %s211, %s212
      %p216 = pneg %p210
      %p217 = scmp.eq.s32.totalorder %s18, 1
      %p218 = por %p216, %p217
      %p219 = scmp.ne.s32.totalorder %s211, %s214
      %p220 = scmp.eq.s32.totalorder %s18, 0
      %p221 = por %p219, %p220
      %p222 = scmp.ne.s32.totalorder %s211, %s214
      %p223 = scmp.eq.s32.totalorder %s23, 1
      %p224 = por %p222, %p223
      %p225 = scmp.ne.s32.totalorder %s214, %s215
      %p226 = scmp.eq.s32.totalorder %s23, 0
      %p227 = por %p225, %p226
      %p228 = scmp.ne.s32.totalorder %s214, %s215
      %p229 = scmp.eq.s32.totalorder %s24, 1
      %p230 = por %p228, %p229
      %p232 = scmp.ne.s32.totalorder %s215, %s231
      %p233 = scmp.eq.s32.totalorder %s24, 0
      %p234 = por %p232, %p233
      %p235 = scmp.le.s32.totalorder 1, %s18
      %p236 = scmp.lt.s32.totalorder %s18, 3
      %p237 = pnand %p235, %p236
      %p238 = pneg %p237
      // Predicated region
      $region9: #{tpu_custom_call.1} parent=5 // pred_check
        _
      $region10: #{tpu_custom_call.1} parent=5 // pred_check_branch
        %240 = sbr.rel (%p237) target = $region12
      $region11: #{tpu_custom_call.1} parent=5 // pred_region
        %s241 = ssub.s32 %s18, 1
        // Predicated region
        $region13: #{tpu_custom_call.1} parent=11 // pred_check
          %p242 = pneg %p65
        $region14: #{tpu_custom_call.1} parent=11 // pred_check_branch
          %244 = sbr.rel (%p242) target = $region16
        $region15: #{tpu_custom_call.1} parent=11 // pred_region
          _
        $region16: #{tpu_custom_call.1} parent=11 // pred_fallthru
          _
        // Predicated region
        $region17: #{tpu_custom_call.1} parent=11 // pred_check
          %p245 = pneg %p86
        $region18: #{tpu_custom_call.1} parent=11 // pred_check_branch
          %247 = sbr.rel (%p245) target = $region20
        $region19: #{tpu_custom_call.1} parent=11 // pred_region
          _
        $region20: #{tpu_custom_call.1} parent=11 // pred_fallthru
          _
        // Predicated region
        $region21: #{tpu_custom_call.1} parent=11 // pred_check
          %p248 = pneg %p107
        $region22: #{tpu_custom_call.1} parent=11 // pred_check_branch
          %250 = sbr.rel (%p248) target = $region24
        $region23: #{tpu_custom_call.1} parent=11 // pred_region
          _
        $region24: #{tpu_custom_call.1} parent=11 // pred_fallthru
          _
        // Predicated region
        $region25: #{tpu_custom_call.1} parent=11 // pred_check
          %p251 = pneg %p128
        $region26: #{tpu_custom_call.1} parent=11 // pred_check_branch
          %253 = sbr.rel (%p251) target = $region28
        $region27: #{tpu_custom_call.1} parent=11 // pred_region
          _
        $region28: #{tpu_custom_call.1} parent=11 // pred_fallthru
          _
        // Predicated region
        $region29: #{tpu_custom_call.1} parent=11 // pred_check
          %p254 = pneg %p149
        $region30: #{tpu_custom_call.1} parent=11 // pred_check_branch
          %256 = sbr.rel (%p254) target = $region32
        $region31: #{tpu_custom_call.1} parent=11 // pred_region
          _
        $region32: #{tpu_custom_call.1} parent=11 // pred_fallthru
          _
      $region12: #{tpu_custom_call.1} parent=5 // pred_fallthru
        _
      %p257 = scmp.lt.s32.totalorder %s18, 2
      // Predicated region
      $region33: #{tpu_custom_call.1} parent=5 // pred_check
        %p258 = pneg %p257
      $region34: #{tpu_custom_call.1} parent=5 // pred_check_branch
        %260 = sbr.rel (%p258) target = $region36
      $region35: #{tpu_custom_call.1} parent=5 // pred_region
        // Predicated region
        $region37: #{tpu_custom_call.1} parent=35 // pred_check
          %p261 = pneg %p38
        $region38: #{tpu_custom_call.1} parent=35 // pred_check_branch
          %263 = sbr.rel (%p261) target = $region40
        $region39: #{tpu_custom_call.1} parent=35 // pred_region
          %s264 = smul.u32 16, %s18
          %p265 = scmp.lt.s32.totalorder %s264, 31
          %s266 = scalar_select %p265, %s264, 31
          %s267 = smul.addr %s266, 8
          %s268 = scalar_lea.vmem %s0, %s267
          %s269 = smul.u32 16, %s18
        $region40: #{tpu_custom_call.1} parent=35 // pred_fallthru
          _
      $region36: #{tpu_custom_call.1} parent=5 // pred_fallthru
        _
      %p270 = scmp.le.s32.totalorder 1, %s18
      %p271 = scmp.lt.s32.totalorder %s18, 3
      %p272 = pnand %p270, %p271
      %p273 = pneg %p272
      // Predicated region
      $region41: #{tpu_custom_call.1} parent=5 // pred_check
        _
      $region42: #{tpu_custom_call.1} parent=5 // pred_check_branch
        %275 = sbr.rel (%p272) target = $region44
      $region43: #{tpu_custom_call.1} parent=5 // pred_region
        %s276 = ssub.s32 %s18, 1
        %s277 = smul.u32 16, %s23
        %p278 = scmp.lt.s32.totalorder %s277, 31
        %s279 = scalar_select %p278, %s277, 31
        %s280 = smul.addr %s279, 8
        %s281 = scalar_lea.vmem %s0, %s280
        %p282 = pneg %p44
        %p283 = pneg %p41
        %p284 = pneg %p65
        %p285 = pneg %p62
        %p286 = pneg %p86
        %p287 = pneg %p83
        %p288 = pneg %p107
        %p289 = pneg %p104
        %p290 = pneg %p128
        %p291 = pneg %p125
        %p292 = pneg %p149
        %p293 = pneg %p146
        %p294 = pneg %p175
        %p295 = pneg %p172
        %s296 = smul.u32 16, %s23
        %p297 = scmp.lt.s32.totalorder %s296, 31
        %s298 = scalar_select %p297, %s296, 31
        %s299 = smul.addr %s298, 8
        %s300 = scalar_lea.vmem %s6, %s299
        %p301 = pneg %p201
        %p302 = pneg %p198
        %s303 = smul.u32 16, %s23
        %p304 = scmp.lt.s32.totalorder %s303, 31
        %s305 = scalar_select %p304, %s303, 31
        %s306 = smul.addr %s305, 8
        %s307 = scalar_lea.vmem %s7, %s306
        %p308 = pneg %p227
        %p309 = pneg %p224
        %s310 = sand.u32 %s214, 1
        %s311 = scalar_lea.sflag [#allocation3], %s310
        %s312 = sand.u32 %s214, 1
        %s313 = scalar_lea.vmem [#allocation2], %s312
        %s314 = smul.u32 16, %s23
        %p315 = scmp.lt.s32.totalorder %s314, 31
        %s316 = scalar_select %p315, %s314, 31
        %s317 = smul.addr %s316, 8
        %s318 = scalar_lea.vmem %s0, %s317
        %s319 = smul.u32 16, %s23
        %s320 = smul.u32 16, %s23
        %p321 = scmp.lt.s32.totalorder %s320, 31
        %s322 = scalar_select %p321, %s320, 31
        %s323 = smul.addr %s322, 8
        %s324 = scalar_lea.vmem %s6, %s323
        %s325 = smul.u32 16, %s23
        %s326 = smul.u32 16, %s23
        %p327 = scmp.lt.s32.totalorder %s326, 31
        %s328 = scalar_select %p327, %s326, 31
        %s329 = smul.addr %s328, 8
        %s330 = scalar_lea.vmem %s7, %s329
        %s331 = smul.u32 16, %s23
        %v332 = vld [vmem:[%s318] sm:$0xff]
        %v333 = vld [vmem:[%s318 + $0x8] sm:$0xff]
        %v334 = vld [vmem:[%s318 + $0x10] sm:$0xff]
        %v335 = vld [vmem:[%s318 + $0x18] sm:$0xff]
        %v336 = vld [vmem:[%s318 + $0x20] sm:$0xff]
        %v337 = vld [vmem:[%s318 + $0x28] sm:$0xff]
        %v338 = vld [vmem:[%s318 + $0x30] sm:$0xff]
        %v339 = vld [vmem:[%s318 + $0x38] sm:$0xff]
        %v340 = vld [vmem:[%s318 + $0x40] sm:$0xff]
        %v341 = vld [vmem:[%s318 + $0x48] sm:$0xff]
        %v342 = vld [vmem:[%s318 + $0x50] sm:$0xff]
        %v343 = vld [vmem:[%s318 + $0x58] sm:$0xff]
        %v344 = vld [vmem:[%s318 + $0x60] sm:$0xff]
        %v345 = vld [vmem:[%s318 + $0x68] sm:$0xff]
        %v346 = vld [vmem:[%s318 + $0x70] sm:$0xff]
        %v347 = vld [vmem:[%s318 + $0x78] sm:$0xff]
        %v348 = vld [vmem:[%s1] sm:$0xff]
        %v349 = vld [vmem:[%s1 + $0x8] sm:$0xff]
        %v350 = vld [vmem:[%s1 + $0x10] sm:$0xff]
        %v351 = vld [vmem:[%s1 + $0x18] sm:$0xff]
        %v352 = vld [vmem:[%s2] sm:$0x1]
        %v354 = vperm.slane %v352, 0
        %vm356 = vcmask 261120
        %v358 = vsel %vm356, %v332, 0
        %v361 = vsel %vm356, %v333, 0
        %v364 = vsel %vm356, %v334, 0
        %v367 = vsel %vm356, %v335, 0
        %v370 = vsel %vm356, %v336, 0
        %v373 = vsel %vm356, %v337, 0
        %v376 = vsel %vm356, %v338, 0
        %v379 = vsel %vm356, %v339, 0
        %v382 = vsel %vm356, %v340, 0
        %v385 = vsel %vm356, %v341, 0
        %v388 = vsel %vm356, %v342, 0
        %v391 = vsel %vm356, %v343, 0
        %v394 = vsel %vm356, %v344, 0
        %v397 = vsel %vm356, %v345, 0
        %v400 = vsel %vm356, %v346, 0
        %v403 = vsel %vm356, %v347, 0
        %405 = vmatpush.msra.mxu0 0.0
        %406 = vmatpush.msra.mxu0 0.0
        %407 = vmatpush.msra.mxu0 0.0
        %408 = vmatpush.msra.mxu0 0.0
        %409 = vmatpush.msra.mxu0 0.0
        %410 = vmatpush.msra.mxu0 0.0
        %411 = vmatpush.msra.mxu0 0.0
        %412 = vmatpush.msra.mxu0 0.0
        %413 = vmatpush.msra.mxu0 0.0
        %414 = vmatpush.msra.mxu0 0.0
        %415 = vmatpush.msra.mxu0 0.0
        %416 = vmatpush.msra.mxu0 0.0
        %417 = vmatpush.msra.mxu0 %v351
        %418 = vmatpush.msra.mxu0 %v350
        %419 = vmatpush.msra.mxu0 %v349
        %420 = vmatpush.msra.mxu0 %v348
        %421 = vmatmul.f32.gmra.mxu0 %v358
        %v422 = vpop.f32.mrf.mxu0
        %v423 = vadd.f32 %v354, %v422
        %424 = vmatmul.f32.gmra.mxu0 %v361
        %v425 = vpop.f32.mrf.mxu0
        %v426 = vadd.f32 %v354, %v425
        %427 = vmatmul.f32.gmra.mxu0 %v364
        %v428 = vpop.f32.mrf.mxu0
        %v429 = vadd.f32 %v354, %v428
        %430 = vmatmul.f32.gmra.mxu0 %v367
        %v431 = vpop.f32.mrf.mxu0
        %v432 = vadd.f32 %v354, %v431
        %433 = vmatmul.f32.gmra.mxu0 %v370
        %v434 = vpop.f32.mrf.mxu0
        %v435 = vadd.f32 %v354, %v434
        %436 = vmatmul.f32.gmra.mxu0 %v373
        %v437 = vpop.f32.mrf.mxu0
        %v438 = vadd.f32 %v354, %v437
        %439 = vmatmul.f32.gmra.mxu0 %v376
        %v440 = vpop.f32.mrf.mxu0
        %v441 = vadd.f32 %v354, %v440
        %442 = vmatmul.f32.gmra.mxu0 %v379
        %v443 = vpop.f32.mrf.mxu0
        %v444 = vadd.f32 %v354, %v443
        %445 = vmatmul.f32.gmra.mxu0 %v382
        %v446 = vpop.f32.mrf.mxu0
        %v447 = vadd.f32 %v354, %v446
        %448 = vmatmul.f32.gmra.mxu0 %v385
        %v449 = vpop.f32.mrf.mxu0
        %v450 = vadd.f32 %v354, %v449
        %451 = vmatmul.f32.gmra.mxu0 %v388
        %v452 = vpop.f32.mrf.mxu0
        %v453 = vadd.f32 %v354, %v452
        %454 = vmatmul.f32.gmra.mxu0 %v391
        %v455 = vpop.f32.mrf.mxu0
        %v456 = vadd.f32 %v354, %v455
        %457 = vmatmul.f32.gmra.mxu0 %v394
        %v458 = vpop.f32.mrf.mxu0
        %v459 = vadd.f32 %v354, %v458
        %460 = vmatmul.f32.gmra.mxu0 %v397
        %v461 = vpop.f32.mrf.mxu0
        %v462 = vadd.f32 %v354, %v461
        %463 = vmatmul.f32.gmra.mxu0 %v400
        %v464 = vpop.f32.mrf.mxu0
        %v465 = vadd.f32 %v354, %v464
        %466 = vmatmul.f32.gmra.mxu0 %v403
        %v467 = vpop.f32.mrf.mxu0
        %v468 = vadd.f32 %v354, %v467
        %469 = vdwg.mxu0
        %v470 = vmax.f32 %v423, 0.0
        %v471 = vmax.f32 %v426, 0.0
        %v472 = vmax.f32 %v429, 0.0
        %v473 = vmax.f32 %v432, 0.0
        %v474 = vmax.f32 %v435, 0.0
        %v475 = vmax.f32 %v438, 0.0
        %v476 = vmax.f32 %v441, 0.0
        %v477 = vmax.f32 %v444, 0.0
        %v478 = vmax.f32 %v447, 0.0
        %v479 = vmax.f32 %v450, 0.0
        %v480 = vmax.f32 %v453, 0.0
        %v481 = vmax.f32 %v456, 0.0
        %v482 = vmax.f32 %v459, 0.0
        %v483 = vmax.f32 %v462, 0.0
        %v484 = vmax.f32 %v465, 0.0
        %v485 = vmax.f32 %v468, 0.0
        %v486 = vld [vmem:[%s3] sm:$0xff]
        %v487 = vld [vmem:[%s3 + $0x8] sm:$0xff]
        %v488 = vld [vmem:[%s3 + $0x10] sm:$0xff]
        %v489 = vld [vmem:[%s3 + $0x18] sm:$0xff]
        %v490 = vld [vmem:[%s4] sm:$0x1]
        %v492 = vperm.slane %v490, 0
        %v495 = vsel %vm356, %v470, 0
        %v498 = vsel %vm356, %v471, 0
        %v501 = vsel %vm356, %v472, 0
        %v504 = vsel %vm356, %v473, 0
        %v507 = vsel %vm356, %v474, 0
        %v510 = vsel %vm356, %v475, 0
        %v513 = vsel %vm356, %v476, 0
        %v516 = vsel %vm356, %v477, 0
        %v519 = vsel %vm356, %v478, 0
        %v522 = vsel %vm356, %v479, 0
        %v525 = vsel %vm356, %v480, 0
        %v528 = vsel %vm356, %v481, 0
        %v531 = vsel %vm356, %v482, 0
        %v534 = vsel %vm356, %v483, 0
        %v537 = vsel %vm356, %v484, 0
        %v540 = vsel %vm356, %v485, 0
        %542 = vmatpush.msra.mxu0 0.0
        %543 = vmatpush.msra.mxu0 0.0
        %544 = vmatpush.msra.mxu0 0.0
        %545 = vmatpush.msra.mxu0 0.0
        %546 = vmatpush.msra.mxu0 0.0
        %547 = vmatpush.msra.mxu0 0.0
        %548 = vmatpush.msra.mxu0 0.0
        %549 = vmatpush.msra.mxu0 0.0
        %550 = vmatpush.msra.mxu0 0.0
        %551 = vmatpush.msra.mxu0 0.0
        %552 = vmatpush.msra.mxu0 0.0
        %553 = vmatpush.msra.mxu0 0.0
        %554 = vmatpush.msra.mxu0 %v489
        %555 = vmatpush.msra.mxu0 %v488
        %556 = vmatpush.msra.mxu0 %v487
        %557 = vmatpush.msra.mxu0 %v486
        %558 = vmatmul.f32.gmra.mxu0 %v495
        %v559 = vpop.f32.mrf.mxu0
        %v560 = vadd.f32 %v492, %v559
        %561 = vmatmul.f32.gmra.mxu0 %v498
        %v562 = vpop.f32.mrf.mxu0
        %v563 = vadd.f32 %v492, %v562
        %564 = vmatmul.f32.gmra.mxu0 %v501
        %v565 = vpop.f32.mrf.mxu0
        %v566 = vadd.f32 %v492, %v565
        %567 = vmatmul.f32.gmra.mxu0 %v504
        %v568 = vpop.f32.mrf.mxu0
        %v569 = vadd.f32 %v492, %v568
        %570 = vmatmul.f32.gmra.mxu0 %v507
        %v571 = vpop.f32.mrf.mxu0
        %v572 = vadd.f32 %v492, %v571
        %573 = vmatmul.f32.gmra.mxu0 %v510
        %v574 = vpop.f32.mrf.mxu0
        %v575 = vadd.f32 %v492, %v574
        %576 = vmatmul.f32.gmra.mxu0 %v513
        %v577 = vpop.f32.mrf.mxu0
        %v578 = vadd.f32 %v492, %v577
        %579 = vmatmul.f32.gmra.mxu0 %v516
        %v580 = vpop.f32.mrf.mxu0
        %v581 = vadd.f32 %v492, %v580
        %582 = vmatmul.f32.gmra.mxu0 %v519
        %v583 = vpop.f32.mrf.mxu0
        %v584 = vadd.f32 %v492, %v583
        %585 = vmatmul.f32.gmra.mxu0 %v522
        %v586 = vpop.f32.mrf.mxu0
        %v587 = vadd.f32 %v492, %v586
        %588 = vmatmul.f32.gmra.mxu0 %v525
        %v589 = vpop.f32.mrf.mxu0
        %v590 = vadd.f32 %v492, %v589
        %591 = vmatmul.f32.gmra.mxu0 %v528
        %v592 = vpop.f32.mrf.mxu0
        %v593 = vadd.f32 %v492, %v592
        %594 = vmatmul.f32.gmra.mxu0 %v531
        %v595 = vpop.f32.mrf.mxu0
        %v596 = vadd.f32 %v492, %v595
        %597 = vmatmul.f32.gmra.mxu0 %v534
        %v598 = vpop.f32.mrf.mxu0
        %v599 = vadd.f32 %v492, %v598
        %600 = vmatmul.f32.gmra.mxu0 %v537
        %v601 = vpop.f32.mrf.mxu0
        %v602 = vadd.f32 %v492, %v601
        %603 = vmatmul.f32.gmra.mxu0 %v540
        %v604 = vpop.f32.mrf.mxu0
        %v605 = vadd.f32 %v492, %v604
        %606 = vdwg.mxu0
        %v607 = vmax.f32 %v560, 0.0
        %v608 = vmax.f32 %v563, 0.0
        %v609 = vmax.f32 %v566, 0.0
        %v610 = vmax.f32 %v569, 0.0
        %v611 = vmax.f32 %v572, 0.0
        %v612 = vmax.f32 %v575, 0.0
        %v613 = vmax.f32 %v578, 0.0
        %v614 = vmax.f32 %v581, 0.0
        %v615 = vmax.f32 %v584, 0.0
        %v616 = vmax.f32 %v587, 0.0
        %v617 = vmax.f32 %v590, 0.0
        %v618 = vmax.f32 %v593, 0.0
        %v619 = vmax.f32 %v596, 0.0
        %v620 = vmax.f32 %v599, 0.0
        %v621 = vmax.f32 %v602, 0.0
        %v622 = vmax.f32 %v605, 0.0
        %v623 = vld [vmem:[%s5] sm:$0xff]
        %v624 = vld [vmem:[%s5 + $0x8] sm:$0xff]
        %v625 = vld [vmem:[%s5 + $0x10] sm:$0xff]
        %v626 = vld [vmem:[%s5 + $0x18] sm:$0xff]
        %v628 = vsel %vm356, %v607, 0
        %v631 = vsel %vm356, %v608, 0
        %v634 = vsel %vm356, %v609, 0
        %v637 = vsel %vm356, %v610, 0
        %v640 = vsel %vm356, %v611, 0
        %v643 = vsel %vm356, %v612, 0
        %v646 = vsel %vm356, %v613, 0
        %v649 = vsel %vm356, %v614, 0
        %v652 = vsel %vm356, %v615, 0
        %v655 = vsel %vm356, %v616, 0
        %v658 = vsel %vm356, %v617, 0
        %v661 = vsel %vm356, %v618, 0
        %v664 = vsel %vm356, %v619, 0
        %v667 = vsel %vm356, %v620, 0
        %v670 = vsel %vm356, %v621, 0
        %v673 = vsel %vm356, %v622, 0
        %675 = vmatpush.msra.mxu0 0.0
        %676 = vmatpush.msra.mxu0 0.0
        %677 = vmatpush.msra.mxu0 0.0
        %678 = vmatpush.msra.mxu0 0.0
        %679 = vmatpush.msra.mxu0 0.0
        %680 = vmatpush.msra.mxu0 0.0
        %681 = vmatpush.msra.mxu0 0.0
        %682 = vmatpush.msra.mxu0 0.0
        %683 = vmatpush.msra.mxu0 0.0
        %684 = vmatpush.msra.mxu0 0.0
        %685 = vmatpush.msra.mxu0 0.0
        %686 = vmatpush.msra.mxu0 0.0
        %687 = vmatpush.msra.mxu0 %v626
        %688 = vmatpush.msra.mxu0 %v625
        %689 = vmatpush.msra.mxu0 %v624
        %690 = vmatpush.msra.mxu0 %v623
        %691 = vmatmul.f32.gmra.mxu0 %v628
        %v692 = vpop.f32.mrf.mxu0
        %v693 = vadd.f32 0.0, %v692
        %694 = vmatmul.f32.gmra.mxu0 %v631
        %v695 = vpop.f32.mrf.mxu0
        %v696 = vadd.f32 0.0, %v695
        %697 = vmatmul.f32.gmra.mxu0 %v634
        %v698 = vpop.f32.mrf.mxu0
        %v699 = vadd.f32 0.0, %v698
        %700 = vmatmul.f32.gmra.mxu0 %v637
        %v701 = vpop.f32.mrf.mxu0
        %v702 = vadd.f32 0.0, %v701
        %703 = vmatmul.f32.gmra.mxu0 %v640
        %v704 = vpop.f32.mrf.mxu0
        %v705 = vadd.f32 0.0, %v704
        %706 = vmatmul.f32.gmra.mxu0 %v643
        %v707 = vpop.f32.mrf.mxu0
        %v708 = vadd.f32 0.0, %v707
        %709 = vmatmul.f32.gmra.mxu0 %v646
        %v710 = vpop.f32.mrf.mxu0
        %v711 = vadd.f32 0.0, %v710
        %712 = vmatmul.f32.gmra.mxu0 %v649
        %v713 = vpop.f32.mrf.mxu0
        %v714 = vadd.f32 0.0, %v713
        %715 = vmatmul.f32.gmra.mxu0 %v652
        %v716 = vpop.f32.mrf.mxu0
        %v717 = vadd.f32 0.0, %v716
        %718 = vmatmul.f32.gmra.mxu0 %v655
        %v719 = vpop.f32.mrf.mxu0
        %v720 = vadd.f32 0.0, %v719
        %721 = vmatmul.f32.gmra.mxu0 %v658
        %v722 = vpop.f32.mrf.mxu0
        %v723 = vadd.f32 0.0, %v722
        %724 = vmatmul.f32.gmra.mxu0 %v661
        %v725 = vpop.f32.mrf.mxu0
        %v726 = vadd.f32 0.0, %v725
        %727 = vmatmul.f32.gmra.mxu0 %v664
        %v728 = vpop.f32.mrf.mxu0
        %v729 = vadd.f32 0.0, %v728
        %730 = vmatmul.f32.gmra.mxu0 %v667
        %v731 = vpop.f32.mrf.mxu0
        %v732 = vadd.f32 0.0, %v731
        %733 = vmatmul.f32.gmra.mxu0 %v670
        %v734 = vpop.f32.mrf.mxu0
        %v735 = vadd.f32 0.0, %v734
        %736 = vmatmul.f32.gmra.mxu0 %v673
        %v737 = vpop.f32.mrf.mxu0
        %v738 = vadd.f32 0.0, %v737
        %739 = vdwg.mxu0
        %740 = vst.msk [vmem:[%s324] sm:$0xff] %vm356, %v607
        %741 = vst.msk [vmem:[%s324 + $0x8] sm:$0xff] %vm356, %v608
        %742 = vst.msk [vmem:[%s324 + $0x10] sm:$0xff] %vm356, %v609
        %743 = vst.msk [vmem:[%s324 + $0x18] sm:$0xff] %vm356, %v610
        %744 = vst.msk [vmem:[%s324 + $0x20] sm:$0xff] %vm356, %v611
        %745 = vst.msk [vmem:[%s324 + $0x28] sm:$0xff] %vm356, %v612
        %746 = vst.msk [vmem:[%s324 + $0x30] sm:$0xff] %vm356, %v613
        %747 = vst.msk [vmem:[%s324 + $0x38] sm:$0xff] %vm356, %v614
        %748 = vst.msk [vmem:[%s324 + $0x40] sm:$0xff] %vm356, %v615
        %749 = vst.msk [vmem:[%s324 + $0x48] sm:$0xff] %vm356, %v616
        %750 = vst.msk [vmem:[%s324 + $0x50] sm:$0xff] %vm356, %v617
        %751 = vst.msk [vmem:[%s324 + $0x58] sm:$0xff] %vm356, %v618
        %752 = vst.msk [vmem:[%s324 + $0x60] sm:$0xff] %vm356, %v619
        %753 = vst.msk [vmem:[%s324 + $0x68] sm:$0xff] %vm356, %v620
        %754 = vst.msk [vmem:[%s324 + $0x70] sm:$0xff] %vm356, %v621
        %755 = vst.msk [vmem:[%s324 + $0x78] sm:$0xff] %vm356, %v622
        %756 = vst.msk [vmem:[%s330] sm:$0xff] %vm356, %v693
        %757 = vst.msk [vmem:[%s330 + $0x8] sm:$0xff] %vm356, %v696
        %758 = vst.msk [vmem:[%s330 + $0x10] sm:$0xff] %vm356, %v699
        %759 = vst.msk [vmem:[%s330 + $0x18] sm:$0xff] %vm356, %v702
        %760 = vst.msk [vmem:[%s330 + $0x20] sm:$0xff] %vm356, %v705
        %761 = vst.msk [vmem:[%s330 + $0x28] sm:$0xff] %vm356, %v708
        %762 = vst.msk [vmem:[%s330 + $0x30] sm:$0xff] %vm356, %v711
        %763 = vst.msk [vmem:[%s330 + $0x38] sm:$0xff] %vm356, %v714
        %764 = vst.msk [vmem:[%s330 + $0x40] sm:$0xff] %vm356, %v717
        %765 = vst.msk [vmem:[%s330 + $0x48] sm:$0xff] %vm356, %v720
        %766 = vst.msk [vmem:[%s330 + $0x50] sm:$0xff] %vm356, %v723
        %767 = vst.msk [vmem:[%s330 + $0x58] sm:$0xff] %vm356, %v726
        %768 = vst.msk [vmem:[%s330 + $0x60] sm:$0xff] %vm356, %v729
        %769 = vst.msk [vmem:[%s330 + $0x68] sm:$0xff] %vm356, %v732
        %770 = vst.msk [vmem:[%s330 + $0x70] sm:$0xff] %vm356, %v735
        %771 = vst.msk [vmem:[%s330 + $0x78] sm:$0xff] %vm356, %v738
        %v772 = vsel %vm356, %v693, -inf
        %v773 = vsel %vm356, %v696, -inf
        %v774 = vsel %vm356, %v699, -inf
        %v775 = vsel %vm356, %v702, -inf
        %v776 = vsel %vm356, %v705, -inf
        %v777 = vmax.f32 %v772, %v776
        %v778 = vsel %vm356, %v708, -inf
        %v779 = vmax.f32 %v773, %v778
        %v780 = vsel %vm356, %v711, -inf
        %v781 = vmax.f32 %v774, %v780
        %v782 = vsel %vm356, %v714, -inf
        %v783 = vmax.f32 %v775, %v782
        %v784 = vsel %vm356, %v717, -inf
        %v785 = vmax.f32 %v777, %v784
        %v786 = vsel %vm356, %v720, -inf
        %v787 = vmax.f32 %v779, %v786
        %v788 = vsel %vm356, %v723, -inf
        %v789 = vmax.f32 %v781, %v788
        %v790 = vsel %vm356, %v726, -inf
        %v791 = vmax.f32 %v783, %v790
        %v792 = vsel %vm356, %v729, -inf
        %v793 = vmax.f32 %v785, %v792
        %v794 = vsel %vm356, %v732, -inf
        %v795 = vmax.f32 %v787, %v794
        %v796 = vsel %vm356, %v735, -inf
        %v797 = vmax.f32 %v789, %v796
        %v798 = vsel %vm356, %v738, -inf
        %v799 = vmax.f32 %v791, %v798
        %v800 = vmax.f32 %v793, %v795
        %v801 = vmax.f32 %v797, %v799
        %v802 = vmax.f32 %v800, %v801
        %v803 = vrot.slane %v802, 4
        %v804 = vmax.f32 %v802, %v803
        %v805 = vrot.slane %v804, 2
        %v806 = vmax.f32 %v804, %v805
        %v807 = vrot.slane %v806, 1
        %v808 = vmax.f32 %v806, %v807
        %vm809 = vcmask 253952
        %810 = vst.msk [vmem:[%s313] sm:$0x1] %vm809, %v808
        %s811 = smul.u32 16, %s23
        %p812 = scmp.lt.s32.totalorder %s811, 31
        %s813 = scalar_select %p812, %s811, 31
        %s814 = smul.addr %s813, 8
        %s815 = scalar_lea.vmem %s6, %s814
        %s816 = smul.u32 16, %s23
        %p817 = scmp.lt.s32.totalorder %s816, 31
        %s818 = scalar_select %p817, %s816, 31
        %s819 = smul.addr %s818, 8
        %s820 = scalar_lea.vmem %s7, %s819
        %s821 = sand.u32 %s214, 1
        %s822 = scalar_lea.sflag [#allocation3], %s821
        %s823 = sand.u32 %s214, 1
        %s824 = scalar_lea.vmem [#allocation2], %s823
        // Predicated region
        $region45: #{tpu_custom_call.1} parent=43 // pred_check
          %p825 = pneg %p172
        $region46: #{tpu_custom_call.1} parent=43 // pred_check_branch
          %827 = sbr.rel (%p825) target = $region48
        $region47: #{tpu_custom_call.1} parent=43 // pred_region
          %s828 = smul.u32 16, %s23
        $region48: #{tpu_custom_call.1} parent=43 // pred_fallthru
          _
        // Predicated region
        $region49: #{tpu_custom_call.1} parent=43 // pred_check
          %p829 = pneg %p198
        $region50: #{tpu_custom_call.1} parent=43 // pred_check_branch
          %831 = sbr.rel (%p829) target = $region52
        $region51: #{tpu_custom_call.1} parent=43 // pred_region
          %s832 = smul.u32 16, %s23
        $region52: #{tpu_custom_call.1} parent=43 // pred_fallthru
          _
        // Predicated region
        $region53: #{tpu_custom_call.1} parent=43 // pred_check
          %p833 = pneg %p224
        $region54: #{tpu_custom_call.1} parent=43 // pred_check_branch
          %835 = sbr.rel (%p833) target = $region56
        $region55: #{tpu_custom_call.1} parent=43 // pred_region
          %837 = vsyncadd %s822, 0
          %s838 = scalar_lea.hbm %s8, %s23
          %s840 = sshll.u32 %s824, 4
          %s841 = int_to_ptr.vmem [resolvable:$true] %s840
          %s842 = sshll.u32 %s838, 4
          %s843 = int_to_ptr.hbm [resolvable:$true] %s842
          %845 = dma.vmem_to_hbm [thread:$0]  %s841, 16, %s843, %s822
        $region56: #{tpu_custom_call.1} parent=43 // pred_fallthru
          _
      $region44: #{tpu_custom_call.1} parent=5 // pred_fallthru
        _
      %p846 = scmp.le.s32.totalorder 2, %s18
      // Predicated region
      $region57: #{tpu_custom_call.1} parent=5 // pred_check
        %p847 = pneg %p846
      $region58: #{tpu_custom_call.1} parent=5 // pred_check_branch
        %849 = sbr.rel (%p847) target = $region60
      $region59: #{tpu_custom_call.1} parent=5 // pred_region
        %s850 = ssub.s32 %s18, 2
        // Predicated region
        $region61: #{tpu_custom_call.1} parent=59 // pred_check
          %p851 = pneg %p178
        $region62: #{tpu_custom_call.1} parent=59 // pred_check_branch
          %853 = sbr.rel (%p851) target = $region64
        $region63: #{tpu_custom_call.1} parent=59 // pred_region
          %s854 = smul.u32 16, %s24
          %p855 = scmp.lt.s32.totalorder %s854, 31
          %s856 = scalar_select %p855, %s854, 31
          %s857 = smul.addr %s856, 8
          %s858 = scalar_lea.vmem %s6, %s857
        $region64: #{tpu_custom_call.1} parent=59 // pred_fallthru
          _
        // Predicated region
        $region65: #{tpu_custom_call.1} parent=59 // pred_check
          %p859 = pneg %p204
        $region66: #{tpu_custom_call.1} parent=59 // pred_check_branch
          %861 = sbr.rel (%p859) target = $region68
        $region67: #{tpu_custom_call.1} parent=59 // pred_region
          %s862 = smul.u32 16, %s24
          %p863 = scmp.lt.s32.totalorder %s862, 31
          %s864 = scalar_select %p863, %s862, 31
          %s865 = smul.addr %s864, 8
          %s866 = scalar_lea.vmem %s7, %s865
        $region68: #{tpu_custom_call.1} parent=59 // pred_fallthru
          _
        // Predicated region
        $region69: #{tpu_custom_call.1} parent=59 // pred_check
          %p867 = pneg %p230
        $region70: #{tpu_custom_call.1} parent=59 // pred_check_branch
          %869 = sbr.rel (%p867) target = $region72
        $region71: #{tpu_custom_call.1} parent=59 // pred_region
          %s870 = sand.u32 %s215, 1
          %s871 = scalar_lea.sflag [#allocation3], %s870
          %s872 = sand.u32 %s215, 1
          %s873 = scalar_lea.vmem [#allocation2], %s872
          %875 = dma.done %s871, 16
        $region72: #{tpu_custom_call.1} parent=59 // pred_fallthru
          _
      $region60: #{tpu_custom_call.1} parent=5 // pred_fallthru
        _
    $region6: #{tpu_custom_call.1} parent=1 // loop_footer
      %s22 = sadd.s32 1, %s18
    $region7: #{tpu_custom_call.1} parent=1 // loop_footer_branch
      %17 = sbr.rel target = $region3
    $region8: #{tpu_custom_call.1} parent=1 // loop_exit
      _
    %876 = vsyncpa [#allocation3], 1
    %s877 = scalar_lea.sflag [#allocation3], 1
    %878 = vsyncpa %s877, 1

</llo_original>
